<compile_context>
chip_gen: v7x
topology: tpu7x:2x2x1
jax: 0.10.0
libtpu: 0.0.40
codegen_flags: <defaults>
</compile_context>

<pallas_src>
import functools

import jax
import jax.numpy as jnp
from jax.experimental import pallas as pl
from jax.experimental.pallas import tpu as pltpu

_LANE = 128
_SUBLANE = 8


def _round_up(x, m):
    return (x + m - 1) // m * m


def _behavior_policy_kernel(x_ref, w1_ref, b1_ref, w2_ref, b2_ref,
                            w3_ref, b3_ref, out_ref, *, action_dim):
    """One batch tile: fc1->relu->fc2->relu->fc3->softmax->renorm.

    x is f32 (unpadded feature dim); fc1 runs in f32 (K is tiny), fc2/fc3 use
    bf16 MXU operands with f32 accumulation. Hidden/logit lanes are padded to
    128; padded logit lanes are masked to -1e30 so they carry exactly zero
    probability, and only the valid action lanes are stored.
    """
    # --- fc1 + relu (f32: K = state_dim is tiny, keeps full input precision) ---
    h1 = jnp.dot(x_ref[...], w1_ref[...], preferred_element_type=jnp.float32)
    h1 = jnp.maximum(h1 + b1_ref[...], 0.0)

    # --- fc2 + relu ---
    h2 = jnp.dot(h1.astype(jnp.bfloat16), w2_ref[...],
                 preferred_element_type=jnp.float32)
    h2 = jnp.maximum(h2 + b2_ref[...], 0.0)

    # --- fc3 ---
    logits = jnp.dot(h2.astype(jnp.bfloat16), w3_ref[...],
                     preferred_element_type=jnp.float32)
    logits = logits + b3_ref[...]

    # Mask the zero-padded action lanes (static Python branch).
    if action_dim < logits.shape[-1]:
        lane = jax.lax.broadcasted_iota(jnp.int32, logits.shape, 1)
        logits = jnp.where(lane < action_dim, logits, -1e30)

    # --- softmax(dim=-1): single exact f32 normalization. The module's
    #     explicit `p / p.sum()` renorm is subsumed by the exact divide
    #     (sum of the result is already 1 up to f32 rounding). ---
    m = jnp.max(logits, axis=-1, keepdims=True)
    e = jnp.exp(logits - m)
    probs = e / jnp.sum(e, axis=-1, keepdims=True)

    # Note: the original module's `.reshape((-1, action_dim))` discards its
    # result, so the output shape is unchanged.
    # Store only the valid action lanes (out_ref last dim == action_dim).
    out_ref[...] = probs[:, :action_dim].astype(out_ref.dtype)


def prepare_params(params, state_dim, action_dim, hidden_dim):
    """One-time prep (hoisted out of the per-call path): pad hidden/action
    dims to 128 lanes, cast the large matmul operands (w2, w3) to bf16.
    w1 keeps its true K = state_dim (no input-side padding needed)."""
    hp = _round_up(hidden_dim, _LANE)
    ap = _round_up(action_dim, _LANE)

    def pad2(w, r, c):
        return jnp.pad(w, ((0, r - w.shape[0]), (0, c - w.shape[1])))

    w1 = pad2(params["w1"], state_dim, hp).astype(jnp.float32)   # (state_dim, hp)
    w2 = pad2(params["w2"], hp, hp).astype(jnp.bfloat16)
    w3 = pad2(params["w3"], hp, ap).astype(jnp.bfloat16)
    b1 = jnp.pad(params["b1"], (0, hp - hidden_dim)).reshape(1, hp).astype(jnp.float32)
    b2 = jnp.pad(params["b2"], (0, hp - hidden_dim)).reshape(1, hp).astype(jnp.float32)
    b3 = jnp.pad(params["b3"], (0, ap - action_dim)).reshape(1, ap).astype(jnp.float32)

    return {"w1": w1, "b1": b1, "w2": w2, "b2": b2, "w3": w3, "b3": b3,
            "dims": (state_dim, action_dim, hidden_dim, hp, ap)}


def behavior_policy_forward(state, prepped, *, batch_tile=1024):
    """state: [B, state_dim] float32. prepped: output of prepare_params.
    Returns [B, action_dim] float32 action probabilities."""
    state_dim, action_dim, _hidden_dim, hp, ap = prepped["dims"]
    B = state.shape[0]

    # Large batch tile (default 1024, near the HBM-roofline knee), but split
    # the batch into >=2 tiles when possible so v7x's two TensorCores both get
    # work via the "parallel" grid axis. f32 input -> 8-row sublane alignment.
    tb = min(batch_tile, max(_SUBLANE, _round_up(pl.cdiv(B, 2), _SUBLANE)))
    b_pad = _round_up(B, tb)

    # Only batch padding (if any); feature dim stays unpadded f32.
    x = state if b_pad == B else jnp.pad(state, ((0, b_pad - B), (0, 0)))

    kernel = functools.partial(_behavior_policy_kernel, action_dim=action_dim)
    resident = lambda shape: pl.BlockSpec(shape, lambda i: (0, 0))

    flops = 2 * b_pad * (state_dim * hp + hp * hp + hp * ap)
    bytes_accessed = (
        b_pad * state_dim * 4                    # input
        + state_dim * hp * 4 + hp * hp * 2 + hp * ap * 2   # weights
        + 2 * hp * 4 + ap * 4                    # biases
        + b_pad * action_dim * 4                 # output
    )

    out = pl.pallas_call(
        kernel,
        out_shape=jax.ShapeDtypeStruct((b_pad, action_dim), jnp.float32),
        grid=(b_pad // tb,),
        in_specs=[
            pl.BlockSpec((tb, state_dim), lambda i: (i, 0)),  # batch-tiled input
            resident((state_dim, hp)),                        # w1 (resident)
            resident((1, hp)),                                # b1
            resident((hp, hp)),                               # w2
            resident((1, hp)),                                # b2
            resident((hp, ap)),                               # w3
            resident((1, ap)),                                # b3
        ],
        out_specs=pl.BlockSpec((tb, action_dim), lambda i: (i, 0)),
        compiler_params=pltpu.CompilerParams(
            dimension_semantics=("parallel",),  # shard batch tiles on v7x's 2 TCs
        ),
        cost_estimate=pl.CostEstimate(
            flops=flops,
            transcendentals=b_pad * ap,
            bytes_accessed=bytes_accessed,
        ),
    )(x, prepped["w1"], prepped["b1"], prepped["w2"], prepped["b2"],
      prepped["w3"], prepped["b3"])

    # Only batch padding (if any) to strip; no lane slice — output is compact.
    return out if b_pad == B else out[:B]


def init_params(key, state_dim, action_dim, hidden_dim):
    """Deterministic init mimicking PyTorch nn.Linear default U(-1/sqrt(fan_in), +)."""
    ks = jax.random.split(key, 6)

    def linear_init(kw, kb, fan_in, fan_out):
        bound = 1.0 / jnp.sqrt(fan_in)
        w = jax.random.uniform(kw, (fan_in, fan_out), jnp.float32, -bound, bound)
        b = jax.random.uniform(kb, (fan_out,), jnp.float32, -bound, bound)
        return w, b

    w1, b1 = linear_init(ks[0], ks[1], state_dim, hidden_dim)
    w2, b2 = linear_init(ks[2], ks[3], hidden_dim, hidden_dim)
    w3, b3 = linear_init(ks[4], ks[5], hidden_dim, action_dim)
    return {"w1": w1, "b1": b1, "w2": w2, "b2": b2, "w3": w3, "b3": b3}


if __name__ == "__main__":
    key = jax.random.PRNGKey(0)
    k_state, k_params = jax.random.split(key)

    batch = 8
    state_dim = 16
    hidden_dim = 32
    action_dim = 4

    state = jax.random.normal(k_state, (batch, state_dim), jnp.float32)
    params = init_params(k_params, state_dim, action_dim, hidden_dim)
    prepped = prepare_params(params, state_dim, action_dim, hidden_dim)

    probs = behavior_policy_forward(state, prepped)
    probs = jax.block_until_ready(probs)

    # Reference check in plain JAX (full f32).
    def ref_forward(x, p):
        h1 = jnp.maximum(x @ p["w1"] + p["b1"], 0.0)
        h2 = jnp.maximum(h1 @ p["w2"] + p["b2"], 0.0)
        logits = h2 @ p["w3"] + p["b3"]
        ap = jax.nn.softmax(logits, axis=-1)
        ap = ap / jnp.sum(ap, axis=-1, keepdims=True)
        return ap

    ref = ref_forward(state, params)
    assert probs.shape == (batch, action_dim)
    # bf16 fc2/fc3 operands + f32 accumulation -> tolerance vs the f32 reference.
    assert jnp.allclose(probs, ref, atol=2e-2, rtol=0.0), "mismatch vs reference"
    # Exact f32 softmax divide keeps rows summing to 1 tightly.
    assert jnp.allclose(jnp.sum(probs, axis=-1), 1.0, atol=1e-5)

    print("KERNEL_OK")
</pallas_src>

<mosaic_0001>
module attributes {stable_mosaic.version = 11 : i64} {
  func.func @_behavior_policy_kernel(%arg0: i32, %arg1: memref<8x16xf32, #tpu.memory_space<vmem>>, %arg2: memref<16x128xf32, #tpu.memory_space<vmem>>, %arg3: memref<1x128xf32, #tpu.memory_space<vmem>>, %arg4: memref<128x128xbf16, #tpu.memory_space<vmem>>, %arg5: memref<1x128xf32, #tpu.memory_space<vmem>>, %arg6: memref<128x128xbf16, #tpu.memory_space<vmem>>, %arg7: memref<1x128xf32, #tpu.memory_space<vmem>>, %arg8: memref<8x4xf32, #tpu.memory_space<vmem>>) attributes {dimension_semantics = [#tpu.dimension_semantics<parallel>], iteration_bounds = array<i64: 1>, scalar_prefetch = 0 : i64, scratch_operands = 0 : i64, tpu.core_type = #tpu.core_type<tc>, window_params = [{transform_indices = @transform_0, window_bounds = array<i64: 8, 16>}, {pipeline_mode = #tpu.pipeline_mode<synchronous>, transform_indices = @transform_1, window_bounds = array<i64: 16, 128>}, {pipeline_mode = #tpu.pipeline_mode<synchronous>, transform_indices = @transform_2, window_bounds = array<i64: 1, 128>}, {pipeline_mode = #tpu.pipeline_mode<synchronous>, transform_indices = @transform_3, window_bounds = array<i64: 128, 128>}, {pipeline_mode = #tpu.pipeline_mode<synchronous>, transform_indices = @transform_4, window_bounds = array<i64: 1, 128>}, {pipeline_mode = #tpu.pipeline_mode<synchronous>, transform_indices = @transform_5, window_bounds = array<i64: 128, 128>}, {pipeline_mode = #tpu.pipeline_mode<synchronous>, transform_indices = @transform_6, window_bounds = array<i64: 1, 128>}, {transform_indices = @transform_7, window_bounds = array<i64: 8, 4>}]} {
    %c0 = arith.constant 0 : index
    %c0_0 = arith.constant 0 : index
    %0 = vector.load %arg1[%c0, %c0_0] : memref<8x16xf32, #tpu.memory_space<vmem>>, vector<8x16xf32>
    %c0_1 = arith.constant 0 : index
    %c0_2 = arith.constant 0 : index
    %1 = vector.load %arg2[%c0_1, %c0_2] : memref<16x128xf32, #tpu.memory_space<vmem>>, vector<16x128xf32>
    %cst = arith.constant dense<0.000000e+00> : vector<8x128xf32>
    %2 = tpu.matmul %0, %1, %cst {dimension_numbers = #tpu.dot_dimension_numbers<[1], [0], [0], [1], [0, 0, 1, 1], [], []>} : vector<8x16xf32>, vector<16x128xf32>, vector<8x128xf32> -> vector<8x128xf32>
    %c0_3 = arith.constant 0 : index
    %c0_4 = arith.constant 0 : index
    %3 = vector.load %arg3[%c0_3, %c0_4] : memref<1x128xf32, #tpu.memory_space<vmem>>, vector<1x128xf32>
    %4 = vector.broadcast %3 : vector<1x128xf32> to vector<8x128xf32>
    %5 = arith.addf %2, %4 : vector<8x128xf32>
    %cst_5 = arith.constant 0.000000e+00 : f32
    %6 = vector.broadcast %cst_5 : f32 to vector<8x128xf32>
    %7 = arith.maximumf %5, %6 : vector<8x128xf32>
    %8 = arith.truncf %7 : vector<8x128xf32> to vector<8x128xbf16>
    %c0_6 = arith.constant 0 : index
    %c0_7 = arith.constant 0 : index
    %9 = vector.load %arg4[%c0_6, %c0_7] : memref<128x128xbf16, #tpu.memory_space<vmem>>, vector<128x128xbf16>
    %cst_8 = arith.constant dense<0.000000e+00> : vector<8x128xf32>
    %10 = tpu.matmul %8, %9, %cst_8 {dimension_numbers = #tpu.dot_dimension_numbers<[1], [0], [0], [1], [0, 0, 1, 1], [], []>} : vector<8x128xbf16>, vector<128x128xbf16>, vector<8x128xf32> -> vector<8x128xf32>
    %c0_9 = arith.constant 0 : index
    %c0_10 = arith.constant 0 : index
    %11 = vector.load %arg5[%c0_9, %c0_10] : memref<1x128xf32, #tpu.memory_space<vmem>>, vector<1x128xf32>
    %12 = vector.broadcast %11 : vector<1x128xf32> to vector<8x128xf32>
    %13 = arith.addf %10, %12 : vector<8x128xf32>
    %cst_11 = arith.constant 0.000000e+00 : f32
    %14 = vector.broadcast %cst_11 : f32 to vector<8x128xf32>
    %15 = arith.maximumf %13, %14 : vector<8x128xf32>
    %16 = arith.truncf %15 : vector<8x128xf32> to vector<8x128xbf16>
    %c0_12 = arith.constant 0 : index
    %c0_13 = arith.constant 0 : index
    %17 = vector.load %arg6[%c0_12, %c0_13] : memref<128x128xbf16, #tpu.memory_space<vmem>>, vector<128x128xbf16>
    %cst_14 = arith.constant dense<0.000000e+00> : vector<8x128xf32>
    %18 = tpu.matmul %16, %17, %cst_14 {dimension_numbers = #tpu.dot_dimension_numbers<[1], [0], [0], [1], [0, 0, 1, 1], [], []>} : vector<8x128xbf16>, vector<128x128xbf16>, vector<8x128xf32> -> vector<8x128xf32>
    %c0_15 = arith.constant 0 : index
    %c0_16 = arith.constant 0 : index
    %19 = vector.load %arg7[%c0_15, %c0_16] : memref<1x128xf32, #tpu.memory_space<vmem>>, vector<1x128xf32>
    %20 = vector.broadcast %19 : vector<1x128xf32> to vector<8x128xf32>
    %21 = arith.addf %18, %20 : vector<8x128xf32>
    %22 = tpu.iota {dimensions = array<i32: 1>} : vector<8x128xi32>
    %c4_i32 = arith.constant 4 : i32
    %23 = vector.broadcast %c4_i32 : i32 to vector<8x128xi32>
    %24 = arith.cmpi slt, %22, %23 : vector<8x128xi32>
    %cst_17 = arith.constant -1.000000e+30 : f32
    %25 = vector.broadcast %cst_17 : f32 to vector<8x128xf32>
    %26 = arith.select %24, %21, %25 : vector<8x128xi1>, vector<8x128xf32>
    %cst_18 = arith.constant dense<0xFF800000> : vector<8xf32>
    %27 = vector.multi_reduction <maximumf>, %26, %cst_18 [1] : vector<8x128xf32> to vector<8xf32>
    %28 = vector.shape_cast %27 : vector<8xf32> to vector<8x1xf32>
    %29 = vector.broadcast %28 : vector<8x1xf32> to vector<8x128xf32>
    %30 = arith.subf %26, %29 : vector<8x128xf32>
    %31 = math.exp %30 : vector<8x128xf32>
    %cst_19 = arith.constant dense<0.000000e+00> : vector<8xf32>
    %32 = vector.multi_reduction <add>, %31, %cst_19 [1] : vector<8x128xf32> to vector<8xf32>
    %33 = vector.shape_cast %32 : vector<8xf32> to vector<8x1xf32>
    %34 = vector.broadcast %33 : vector<8x1xf32> to vector<8x128xf32>
    %35 = arith.divf %31, %34 : vector<8x128xf32>
    %36 = vector.extract_strided_slice %35 {offsets = [0, 0], sizes = [8, 4], strides = [1, 1]} : vector<8x128xf32> to vector<8x4xf32>
    %c0_20 = arith.constant 0 : index
    %c0_21 = arith.constant 0 : index
    %37 = vector.load %arg8[%c0_20, %c0_21] : memref<8x4xf32, #tpu.memory_space<vmem>>, vector<8x4xf32>
    tpu.vector_store %arg8[%c0_20, %c0_21], %36 {strides = array<i32>} : memref<8x4xf32, #tpu.memory_space<vmem>>, vector<8x4xf32>,
    return
  }
  func.func @transform_0(%arg0: i32) -> (i32, i32) {
    %c0_i32 = arith.constant 0 : i32
    %c0_i32_0 = arith.constant 0 : i32
    return %arg0, %c0_i32 : i32, i32
  }
  func.func @transform_1(%arg0: i32) -> (i32, i32) {
    %c0_i32 = arith.constant 0 : i32
    %c0_i32_0 = arith.constant 0 : i32
    %c0_i32_1 = arith.constant 0 : i32
    return %c0_i32, %c0_i32_0 : i32, i32
  }
  func.func @transform_2(%arg0: i32) -> (i32, i32) {
    %c0_i32 = arith.constant 0 : i32
    %c0_i32_0 = arith.constant 0 : i32
    %c0_i32_1 = arith.constant 0 : i32
    return %c0_i32, %c0_i32_0 : i32, i32
  }
  func.func @transform_3(%arg0: i32) -> (i32, i32) {
    %c0_i32 = arith.constant 0 : i32
    %c0_i32_0 = arith.constant 0 : i32
    %c0_i32_1 = arith.constant 0 : i32
    return %c0_i32, %c0_i32_0 : i32, i32
  }
  func.func @transform_4(%arg0: i32) -> (i32, i32) {
    %c0_i32 = arith.constant 0 : i32
    %c0_i32_0 = arith.constant 0 : i32
    %c0_i32_1 = arith.constant 0 : i32
    return %c0_i32, %c0_i32_0 : i32, i32
  }
  func.func @transform_5(%arg0: i32) -> (i32, i32) {
    %c0_i32 = arith.constant 0 : i32
    %c0_i32_0 = arith.constant 0 : i32
    %c0_i32_1 = arith.constant 0 : i32
    return %c0_i32, %c0_i32_0 : i32, i32
  }
  func.func @transform_6(%arg0: i32) -> (i32, i32) {
    %c0_i32 = arith.constant 0 : i32
    %c0_i32_0 = arith.constant 0 : i32
    %c0_i32_1 = arith.constant 0 : i32
    return %c0_i32, %c0_i32_0 : i32, i32
  }
  func.func @transform_7(%arg0: i32) -> (i32, i32) {
    %c0_i32 = arith.constant 0 : i32
    %c0_i32_0 = arith.constant 0 : i32
    return %arg0, %c0_i32 : i32, i32
  }
}

</mosaic_0001>

<llo_original>
// kernel: tpu_custom_call.1
$region0: #{tpu_custom_call.1}
  #allocation0 [shape = 'u32[]', space=smem, size = 0x4, offset = 0x4, fixed_abs, tag = 'smem constant byte address 0x4 - core index']
  #allocation1 [shape = 'u32[144,128]{1,0:T(1,128)}', space=vmem, size = 0x12000, scoped, tag = 'internal scratch']
  %s0 = inlined_call_operand.hbm [shape: f32[8,16], index: 0, kind: input, shape index: {}]
  %s1 = inlined_call_operand.hbm [shape: f32[16,128], index: 1, kind: input, shape index: {}]
  %s2 = inlined_call_operand.vmem [shape: f32[1,128], index: 2, kind: input, shape index: {}]
  %s3 = inlined_call_operand.hbm [shape: bf16[128,128], index: 3, kind: input, shape index: {}]
  %s4 = inlined_call_operand.vmem [shape: f32[1,128], index: 4, kind: input, shape index: {}]
  %s5 = inlined_call_operand.hbm [shape: bf16[128,128], index: 5, kind: input, shape index: {}]
  %s6 = inlined_call_operand.vmem [shape: f32[1,128], index: 6, kind: input, shape index: {}]
  %s7 = inlined_call_operand.vmem [shape: f32[8,4], index: 7, kind: output, shape index: {}]
  %s8 = sld [smem:[#allocation0]]
  $region54: #{tpu_custom_call.1} parent=0
    _
  %s10 = ssub.s32 1, %s8
  %s11 = scalar_select 0, %s10, %s8
  $region1: #{tpu_custom_call.1} parent=0
    #allocation2 [shape = 'u8[4096]{0}', space=vmem, size = 0x1000, scoped, tag = 'input window, operand 0, single buffered']
    #allocation3 [shape = 's32[1]{0}', space=sflag, size = 0x4, scoped, tag = 'scoped memory for tpu_custom_call.1']
    #allocation4 [shape = 'u8[8192]{0}', space=vmem, size = 0x2000, scoped, tag = 'input window, operand 1, single buffered']
    #allocation5 [shape = 's32[1]{0}', space=sflag, size = 0x4, scoped, tag = 'scoped memory for tpu_custom_call.1']
    #allocation6 [shape = 'u8[32768]{0}', space=vmem, size = 0x8000, scoped, tag = 'input window, operand 3, single buffered']
    #allocation7 [shape = 'u8[32768]{0}', space=vmem, size = 0x8000, scoped, tag = 'input window, operand 5, single buffered']
    #allocation8 [shape = 's32[1]{0}', space=sflag, size = 0x4, scoped, tag = 'scoped memory for tpu_custom_call.1']
    %12 = vsyncpa [#allocation3], 0
    %13 = vsyncpa [#allocation5], 0
    %14 = vsyncpa [#allocation8], 0
    // Predicated region
    $region2: #{tpu_custom_call.1} parent=1 // pred_check
      _
    $region3: #{tpu_custom_call.1} parent=1 // pred_check_branch
      %16 = sbr.rel (0) target = $region5
    $region4: #{tpu_custom_call.1} parent=1 // pred_region
      %s18 = ssub.s32 128, 128
      %19 = vsyncadd [#allocation3], %s18
      %s21 = sshll.u32 [#allocation2], 4
      %s22 = int_to_ptr.vmem [resolvable:$true] %s21
      %24 = dma.hbm_to_vmem [thread:$0]  %s0, 128, %s22, [#allocation3]
    $region5: #{tpu_custom_call.1} parent=1 // pred_fallthru
      _
    // Predicated region
    $region6: #{tpu_custom_call.1} parent=1 // pred_check
      _
    $region7: #{tpu_custom_call.1} parent=1 // pred_check_branch
      %26 = sbr.rel (0) target = $region9
    $region8: #{tpu_custom_call.1} parent=1 // pred_region
      %s28 = ssub.s32 256, 256
      %29 = vsyncadd [#allocation5], %s28
      %s30 = sshll.u32 [#allocation4], 4
      %s31 = int_to_ptr.vmem [resolvable:$true] %s30
      %36 = dma.hbm_to_vmem [thread:$0]  %s1, 256, %s31, [#allocation5], 128, 128, 8
    $region9: #{tpu_custom_call.1} parent=1 // pred_fallthru
      _
    // Predicated region
    $region10: #{tpu_custom_call.1} parent=1 // pred_check
      _
    $region11: #{tpu_custom_call.1} parent=1 // pred_check_branch
      %38 = sbr.rel (0) target = $region13
    $region12: #{tpu_custom_call.1} parent=1 // pred_region
      _
    $region13: #{tpu_custom_call.1} parent=1 // pred_fallthru
      _
    // Predicated region
    $region14: #{tpu_custom_call.1} parent=1 // pred_check
      _
    $region15: #{tpu_custom_call.1} parent=1 // pred_check_branch
      %40 = sbr.rel (0) target = $region17
    $region16: #{tpu_custom_call.1} parent=1 // pred_region
      %s42 = ssub.s32 1024, 1024
      %43 = vsyncadd [#allocation5], %s42
      %s44 = sshll.u32 [#allocation6], 4
      %s45 = int_to_ptr.vmem [resolvable:$true] %s44
      %50 = dma.hbm_to_vmem [thread:$0]  %s3, 1024, %s45, [#allocation5], 64, 64, 4
    $region17: #{tpu_custom_call.1} parent=1 // pred_fallthru
      _
    // Predicated region
    $region18: #{tpu_custom_call.1} parent=1 // pred_check
      _
    $region19: #{tpu_custom_call.1} parent=1 // pred_check_branch
      %52 = sbr.rel (0) target = $region21
    $region20: #{tpu_custom_call.1} parent=1 // pred_region
      _
    $region21: #{tpu_custom_call.1} parent=1 // pred_fallthru
      _
    // Predicated region
    $region22: #{tpu_custom_call.1} parent=1 // pred_check
      _
    $region23: #{tpu_custom_call.1} parent=1 // pred_check_branch
      %54 = sbr.rel (0) target = $region25
    $region24: #{tpu_custom_call.1} parent=1 // pred_region
      %s56 = ssub.s32 1024, 1024
      %57 = vsyncadd [#allocation8], %s56
      %s58 = sshll.u32 [#allocation7], 4
      %s59 = int_to_ptr.vmem [resolvable:$true] %s58
      %64 = dma.hbm_to_vmem [thread:$0]  %s5, 1024, %s59, [#allocation8], 64, 64, 4
    $region25: #{tpu_custom_call.1} parent=1 // pred_fallthru
      _
    // Predicated region
    $region26: #{tpu_custom_call.1} parent=1 // pred_check
      _
    $region27: #{tpu_custom_call.1} parent=1 // pred_check_branch
      %66 = sbr.rel (0) target = $region29
    $region28: #{tpu_custom_call.1} parent=1 // pred_region
      _
    $region29: #{tpu_custom_call.1} parent=1 // pred_fallthru
      _
    // Predicated region
    $region30: #{tpu_custom_call.1} parent=1 // pred_check
      _
    $region31: #{tpu_custom_call.1} parent=1 // pred_check_branch
      %68 = sbr.rel (0) target = $region33
    $region32: #{tpu_custom_call.1} parent=1 // pred_region
      %69 = dma.done [#allocation3], 128
    $region33: #{tpu_custom_call.1} parent=1 // pred_fallthru
      _
    // Predicated region
    $region34: #{tpu_custom_call.1} parent=1 // pred_check
      _
    $region35: #{tpu_custom_call.1} parent=1 // pred_check_branch
      %71 = sbr.rel (0) target = $region37
    $region36: #{tpu_custom_call.1} parent=1 // pred_region
      %72 = dma.done [#allocation5], 256
    $region37: #{tpu_custom_call.1} parent=1 // pred_fallthru
      _
    // Predicated region
    $region38: #{tpu_custom_call.1} parent=1 // pred_check
      _
    $region39: #{tpu_custom_call.1} parent=1 // pred_check_branch
      %74 = sbr.rel (0) target = $region41
    $region40: #{tpu_custom_call.1} parent=1 // pred_region
      %75 = dma.done [#allocation5], 1024
    $region41: #{tpu_custom_call.1} parent=1 // pred_fallthru
      _
    // Predicated region
    $region42: #{tpu_custom_call.1} parent=1 // pred_check
      _
    $region43: #{tpu_custom_call.1} parent=1 // pred_check_branch
      %77 = sbr.rel (0) target = $region45
    $region44: #{tpu_custom_call.1} parent=1 // pred_region
      %78 = dma.done [#allocation8], 1024
    $region45: #{tpu_custom_call.1} parent=1 // pred_fallthru
      _
    %v80 = vld [vmem:[#allocation2] sm:$0xff]
    %v81 = vld [vmem:[#allocation4] sm:$0xff]
    %v82 = vld [vmem:[#allocation4 + $0x8] sm:$0xff]
    %v83 = vld [vmem:[%s2] sm:$0x1]
    %v85 = vlaneseq
    %v86 = vshrl.u32 %v85, 7
    %v87 = vsub.s32 0, %v86
    %v88 = vrot.slane %v83, %v87
    %vm90 = vcmask 130048
    %v92 = vsel %vm90, %v80, 0
    %94 = vmatprep.subr.mxu0 0.0
    %95 = vmatpush1.msra.mxu0 %v81
    %96 = vmatprep.subr.mxu0 0.0
    %97 = vmatpush1.msra.mxu0 %v82
    %98 = vmatprep.subr.mxu0 0.0
    %99 = vmatpush1.msra.mxu0 0.0
    %100 = vmatprep.subr.mxu0 0.0
    %101 = vmatpush1.msra.mxu0 0.0
    %102 = vmatprep.subr.mxu0 0.0
    %103 = vmatpush1.msra.mxu0 0.0
    %104 = vmatprep.subr.mxu0 0.0
    %105 = vmatpush1.msra.mxu0 0.0
    %106 = vmatprep.subr.mxu0 0.0
    %107 = vmatpush1.msra.mxu0 0.0
    %108 = vmatprep.subr.mxu0 0.0
    %109 = vmatpush1.msra.mxu0 0.0
    %110 = vmatprep.subr.mxu0 0.0
    %111 = vmatpush1.msra.mxu0 0.0
    %112 = vmatprep.subr.mxu0 0.0
    %113 = vmatpush1.msra.mxu0 0.0
    %114 = vmatprep.subr.mxu0 0.0
    %115 = vmatpush1.msra.mxu0 0.0
    %116 = vmatprep.subr.mxu0 0.0
    %117 = vmatpush1.msra.mxu0 0.0
    %118 = vmatprep.subr.mxu0 0.0
    %119 = vmatpush1.msra.mxu0 0.0
    %120 = vmatprep.subr.mxu0 0.0
    %121 = vmatpush1.msra.mxu0 0.0
    %122 = vmatprep.subr.mxu0 0.0
    %123 = vmatpush1.msra.mxu0 0.0
    %124 = vmatprep.subr.mxu0 0.0
    %125 = vmatpush1.msra.mxu0 0.0
    %126 = vmatprep.subr.mxu0 0.0
    %127 = vmatpush1.msra.mxu0 0.0
    %128 = vmatprep.subr.mxu0 0.0
    %129 = vmatpush1.msra.mxu0 0.0
    %130 = vmatprep.subr.mxu0 0.0
    %131 = vmatpush1.msra.mxu0 0.0
    %132 = vmatprep.subr.mxu0 0.0
    %133 = vmatpush1.msra.mxu0 0.0
    %134 = vmatprep.subr.mxu0 0.0
    %135 = vmatpush1.msra.mxu0 0.0
    %136 = vmatprep.subr.mxu0 0.0
    %137 = vmatpush1.msra.mxu0 0.0
    %138 = vmatprep.subr.mxu0 0.0
    %139 = vmatpush1.msra.mxu0 0.0
    %140 = vmatprep.subr.mxu0 0.0
    %141 = vmatpush1.msra.mxu0 0.0
    %142 = vmatprep.subr.mxu0 0.0
    %143 = vmatpush1.msra.mxu0 0.0
    %144 = vmatprep.subr.mxu0 0.0
    %145 = vmatpush1.msra.mxu0 0.0
    %146 = vmatprep.subr.mxu0 0.0
    %147 = vmatpush1.msra.mxu0 0.0
    %148 = vmatprep.subr.mxu0 0.0
    %149 = vmatpush1.msra.mxu0 0.0
    %150 = vmatprep.subr.mxu0 0.0
    %151 = vmatpush1.msra.mxu0 0.0
    %152 = vmatprep.subr.mxu0 0.0
    %153 = vmatpush1.msra.mxu0 0.0
    %154 = vmatprep.subr.mxu0 0.0
    %155 = vmatpush1.msra.mxu0 0.0
    %156 = vmatprep.subr.mxu0 0.0
    %157 = vmatpush1.msra.mxu0 0.0
    %158 = vmatprep.mubr.f32.mxu0 0.0
    %159 = vmatmul.mubr.f32.gmra.mrb[0].mxu0 %v92
    %v160 = vpop.f32.mrb[0].mxu0
    %v161 = vadd.f32 %v88, %v160
    %v162 = vpop.f32.mrb[0].mxu0
    %163 = vdwg.mxu0
    %v164 = vmax.f32 %v161, 0.0
    %v165 = vpack.c.bf16 %v164, %v164
    %v166 = vld [vmem:[#allocation6] sm:$0xf]
    %v167 = vld [vmem:[#allocation6 + $0x4] sm:$0xf]
    %v168 = vld [vmem:[#allocation6 + $0x8] sm:$0xf]
    %v169 = vld [vmem:[#allocation6 + $0xc] sm:$0xf]
    %v170 = vld [vmem:[#allocation6 + $0x10] sm:$0xf]
    %v171 = vld [vmem:[#allocation6 + $0x14] sm:$0xf]
    %v172 = vld [vmem:[#allocation6 + $0x18] sm:$0xf]
    %v173 = vld [vmem:[#allocation6 + $0x1c] sm:$0xf]
    %v174 = vld [vmem:[#allocation6 + $0x20] sm:$0xf]
    %v175 = vld [vmem:[#allocation6 + $0x24] sm:$0xf]
    %v176 = vld [vmem:[#allocation6 + $0x28] sm:$0xf]
    %v177 = vld [vmem:[#allocation6 + $0x2c] sm:$0xf]
    %v178 = vld [vmem:[#allocation6 + $0x30] sm:$0xf]
    %v179 = vld [vmem:[#allocation6 + $0x34] sm:$0xf]
    %v180 = vld [vmem:[#allocation6 + $0x38] sm:$0xf]
    %v181 = vld [vmem:[#allocation6 + $0x3c] sm:$0xf]
    %v182 = vld [vmem:[%s4] sm:$0x1]
    %v184 = vlaneseq
    %v185 = vshrl.u32 %v184, 7
    %v186 = vsub.s32 0, %v185
    %v187 = vrot.slane %v182, %v186
    %v205 = vunpack.c.l.b16 %v166
    %v206 = vunpack.c.l.b16 %v167
    %v207 = vunpack.c.l.b16 %v168
    %v208 = vunpack.c.l.b16 %v169
    %v209 = vunpack.c.l.b16 %v170
    %v210 = vunpack.c.l.b16 %v171
    %v211 = vunpack.c.l.b16 %v172
    %v212 = vunpack.c.l.b16 %v173
    %v213 = vunpack.c.l.b16 %v174
    %v214 = vunpack.c.l.b16 %v175
    %v215 = vunpack.c.l.b16 %v176
    %v216 = vunpack.c.l.b16 %v177
    %v217 = vunpack.c.l.b16 %v178
    %v218 = vunpack.c.l.b16 %v179
    %v219 = vunpack.c.l.b16 %v180
    %v220 = vunpack.c.l.b16 %v181
    %v221 = vpack.c.b16 %v206, %v205
    %v222 = vpack.c.b16 %v208, %v207
    %v223 = vpack.c.b16 %v210, %v209
    %v224 = vpack.c.b16 %v212, %v211
    %v225 = vpack.c.b16 %v214, %v213
    %v226 = vpack.c.b16 %v216, %v215
    %v227 = vpack.c.b16 %v218, %v217
    %v228 = vpack.c.b16 %v220, %v219
    %237 = vmatprep.subr.bf16.mxu0 0
    %238 = vmatpush1.bf16.msra.mxu0 %v221
    %239 = vmatprep.subr.bf16.mxu0 0
    %240 = vmatpush1.bf16.msra.mxu0 %v222
    %241 = vmatprep.subr.bf16.mxu0 0
    %242 = vmatpush1.bf16.msra.mxu0 %v223
    %243 = vmatprep.subr.bf16.mxu0 0
    %244 = vmatpush1.bf16.msra.mxu0 %v224
    %245 = vmatprep.subr.bf16.mxu0 0
    %246 = vmatpush1.bf16.msra.mxu0 %v225
    %247 = vmatprep.subr.bf16.mxu0 0
    %248 = vmatpush1.bf16.msra.mxu0 %v226
    %249 = vmatprep.subr.bf16.mxu0 0
    %250 = vmatpush1.bf16.msra.mxu0 %v227
    %251 = vmatprep.subr.bf16.mxu0 0
    %252 = vmatpush1.bf16.msra.mxu0 %v228
    %253 = vmatprep.subr.bf16.mxu0 0
    %254 = vmatpush1.bf16.msra.mxu0 0
    %255 = vmatprep.subr.bf16.mxu0 0
    %256 = vmatpush1.bf16.msra.mxu0 0
    %257 = vmatprep.subr.bf16.mxu0 0
    %258 = vmatpush1.bf16.msra.mxu0 0
    %259 = vmatprep.subr.bf16.mxu0 0
    %260 = vmatpush1.bf16.msra.mxu0 0
    %261 = vmatprep.subr.bf16.mxu0 0
    %262 = vmatpush1.bf16.msra.mxu0 0
    %263 = vmatprep.subr.bf16.mxu0 0
    %264 = vmatpush1.bf16.msra.mxu0 0
    %265 = vmatprep.subr.bf16.mxu0 0
    %266 = vmatpush1.bf16.msra.mxu0 0
    %267 = vmatprep.subr.bf16.mxu0 0
    %268 = vmatpush1.bf16.msra.mxu0 0
    %269 = vmatprep.mubr.bf16.mxu0 0
    %270 = vmatmul.mubr.bf16.gmra.mrb[0].mxu0 %v165
    %v271 = vpop.f32.mrb[0].mxu0
    %v272 = vadd.f32 %v187, %v271
    %v273 = vpop.f32.mrb[0].mxu0
    %v274 = vpop.f32.mrb[0].mxu0
    %v275 = vpop.f32.mrb[0].mxu0
    %276 = vdwg.mxu0
    %v277 = vmax.f32 %v272, 0.0
    %v278 = vpack.c.bf16 %v277, %v277
    %v279 = vld [vmem:[#allocation7] sm:$0xf]
    %v280 = vld [vmem:[#allocation7 + $0x4] sm:$0xf]
    %v281 = vld [vmem:[#allocation7 + $0x8] sm:$0xf]
    %v282 = vld [vmem:[#allocation7 + $0xc] sm:$0xf]
    %v283 = vld [vmem:[#allocation7 + $0x10] sm:$0xf]
    %v284 = vld [vmem:[#allocation7 + $0x14] sm:$0xf]
    %v285 = vld [vmem:[#allocation7 + $0x18] sm:$0xf]
    %v286 = vld [vmem:[#allocation7 + $0x1c] sm:$0xf]
    %v287 = vld [vmem:[#allocation7 + $0x20] sm:$0xf]
    %v288 = vld [vmem:[#allocation7 + $0x24] sm:$0xf]
    %v289 = vld [vmem:[#allocation7 + $0x28] sm:$0xf]
    %v290 = vld [vmem:[#allocation7 + $0x2c] sm:$0xf]
    %v291 = vld [vmem:[#allocation7 + $0x30] sm:$0xf]
    %v292 = vld [vmem:[#allocation7 + $0x34] sm:$0xf]
    %v293 = vld [vmem:[#allocation7 + $0x38] sm:$0xf]
    %v294 = vld [vmem:[#allocation7 + $0x3c] sm:$0xf]
    %v295 = vld [vmem:[%s6] sm:$0x1]
    %v297 = vlaneseq
    %v298 = vshrl.u32 %v297, 7
    %v299 = vsub.s32 0, %v298
    %v300 = vrot.slane %v295, %v299
    %v318 = vunpack.c.l.b16 %v279
    %v319 = vunpack.c.l.b16 %v280
    %v320 = vunpack.c.l.b16 %v281
    %v321 = vunpack.c.l.b16 %v282
    %v322 = vunpack.c.l.b16 %v283
    %v323 = vunpack.c.l.b16 %v284
    %v324 = vunpack.c.l.b16 %v285
    %v325 = vunpack.c.l.b16 %v286
    %v326 = vunpack.c.l.b16 %v287
    %v327 = vunpack.c.l.b16 %v288
    %v328 = vunpack.c.l.b16 %v289
    %v329 = vunpack.c.l.b16 %v290
    %v330 = vunpack.c.l.b16 %v291
    %v331 = vunpack.c.l.b16 %v292
    %v332 = vunpack.c.l.b16 %v293
    %v333 = vunpack.c.l.b16 %v294
    %v334 = vpack.c.b16 %v319, %v318
    %v335 = vpack.c.b16 %v321, %v320
    %v336 = vpack.c.b16 %v323, %v322
    %v337 = vpack.c.b16 %v325, %v324
    %v338 = vpack.c.b16 %v327, %v326
    %v339 = vpack.c.b16 %v329, %v328
    %v340 = vpack.c.b16 %v331, %v330
    %v341 = vpack.c.b16 %v333, %v332
    %350 = vmatprep.subr.bf16.mxu0 0
    %351 = vmatpush1.bf16.msra.mxu0 %v334
    %352 = vmatprep.subr.bf16.mxu0 0
    %353 = vmatpush1.bf16.msra.mxu0 %v335
    %354 = vmatprep.subr.bf16.mxu0 0
    %355 = vmatpush1.bf16.msra.mxu0 %v336
    %356 = vmatprep.subr.bf16.mxu0 0
    %357 = vmatpush1.bf16.msra.mxu0 %v337
    %358 = vmatprep.subr.bf16.mxu0 0
    %359 = vmatpush1.bf16.msra.mxu0 %v338
    %360 = vmatprep.subr.bf16.mxu0 0
    %361 = vmatpush1.bf16.msra.mxu0 %v339
    %362 = vmatprep.subr.bf16.mxu0 0
    %363 = vmatpush1.bf16.msra.mxu0 %v340
    %364 = vmatprep.subr.bf16.mxu0 0
    %365 = vmatpush1.bf16.msra.mxu0 %v341
    %366 = vmatprep.subr.bf16.mxu0 0
    %367 = vmatpush1.bf16.msra.mxu0 0
    %368 = vmatprep.subr.bf16.mxu0 0
    %369 = vmatpush1.bf16.msra.mxu0 0
    %370 = vmatprep.subr.bf16.mxu0 0
    %371 = vmatpush1.bf16.msra.mxu0 0
    %372 = vmatprep.subr.bf16.mxu0 0
    %373 = vmatpush1.bf16.msra.mxu0 0
    %374 = vmatprep.subr.bf16.mxu0 0
    %375 = vmatpush1.bf16.msra.mxu0 0
    %376 = vmatprep.subr.bf16.mxu0 0
    %377 = vmatpush1.bf16.msra.mxu0 0
    %378 = vmatprep.subr.bf16.mxu0 0
    %379 = vmatpush1.bf16.msra.mxu0 0
    %380 = vmatprep.subr.bf16.mxu0 0
    %381 = vmatpush1.bf16.msra.mxu0 0
    %382 = vmatprep.mubr.bf16.mxu0 0
    %383 = vmatmul.mubr.bf16.gmra.mrb[0].mxu0 %v278
    %v384 = vpop.f32.mrb[0].mxu0
    %v385 = vadd.f32 %v300, %v384
    %v386 = vpop.f32.mrb[0].mxu0
    %v387 = vpop.f32.mrb[0].mxu0
    %v388 = vpop.f32.mrb[0].mxu0
    %389 = vdwg.mxu0
    %v390 = vlaneseq
    %v391 = vand.u32 %v390, 127
    %vm392 = vcmp.lt.s32.totalorder %v391, 4
    %v393 = vsel %vm392, %v385, -1e+30
    %394 = vmax.xlane.f32.xlu0 %v393
    %v395 = vpop.xlane.xlu0 %394
    %v396 = vsub.f32 %v393, %v395
    %v397 = vmul.f32 %v396, 1.442695
    %v398 = vpow.pop %v397
    %399 = vadd.xlane.f32.xlu0 %v398
    %v400 = vpop.xlane.xlu0 %399
    %v401 = vrcp.pop %v400
    %v402 = vmul.f32 %v398, %v401
    %vm403 = vcmask 31744
    %404 = vst.msk [vmem:[%s7] sm:$0xff] %vm403, %v402
    // Predicated region
    $region46: #{tpu_custom_call.1} parent=1 // pred_check
      _
    $region47: #{tpu_custom_call.1} parent=1 // pred_check_branch
      %406 = sbr.rel (0) target = $region49
    $region48: #{tpu_custom_call.1} parent=1 // pred_region
      _
    $region49: #{tpu_custom_call.1} parent=1 // pred_fallthru
      _
    // Predicated region
    $region50: #{tpu_custom_call.1} parent=1 // pred_check
      _
    $region51: #{tpu_custom_call.1} parent=1 // pred_check_branch
      %408 = sbr.rel (0) target = $region53
    $region52: #{tpu_custom_call.1} parent=1 // pred_region
      _
    $region53: #{tpu_custom_call.1} parent=1 // pred_fallthru
      _
    %409 = vsyncpa [#allocation3], 1
    %410 = vsyncpa [#allocation5], 1
    %411 = vsyncpa [#allocation8], 1

</llo_original>
